<compile_context>
chip_gen: v5e
topology: v5e:2x2
jax: 0.10.0
libtpu: 0.0.40
codegen_flags: <defaults>
</compile_context>

<pallas_src>
import math

import jax
import jax.numpy as jnp
from jax.experimental import pallas as pl
from jax.experimental.pallas import tpu as pltpu


def _device_kind():
    try:
        return jax.devices()[0].device_kind.lower()
    except Exception:
        return ""


def _is_v7x(kind=None):
    kind = _device_kind() if kind is None else kind
    return ("v7" in kind) or ("7x" in kind)


def _default_compute_dtype():
    """bf16 matmul operands on any TPU (v5e/v6e/v7x MXUs all take bf16
    natively; bias/ReLU stay f32 in the kernel). f32 fallback off-TPU."""
    kind = _device_kind()
    return jnp.bfloat16 if "tpu" in kind else jnp.float32


def pack_ensemble_params(params, state_dim, compute_dtype=jnp.float32):
    """One-time repack of VectorizedLinear params into lane-packed form.

    Call this ONCE when parameters are loaded/updated and reuse the result for
    every forward call: the block-diagonal construction is O((E*H)^2) and must
    not sit on the per-call path.

    weight: (E, in, out), bias: (E, 1, out)  ->
      w1s [S, E*H], w1a [A, E*H]          (f32; layer 1 runs in f32)
      w2 / w3 block-diag [E*H, E*H]       (compute_dtype; exact zeros off-diag)
      wq [E*H, 128] (zero-padded cols), biases f32 [1, E*H] / [1, 128]
    """
    w1, b1, w2, b2, w3, b3, wq, bq = params
    E, in_dim, H = w1.shape
    EH = E * H
    # TODO(synk): block-diagonal packing wastes (E-1)/E of MXU FLOPs and E x
    # weight VMEM; if E*H grows beyond ~256, switch to a per-critic blocked
    # layout (grid/loop over E with [H, H] lane-dense matmuls) instead.
    eye = jnp.eye(E, dtype=jnp.float32)

    w1p = jnp.transpose(w1, (1, 0, 2)).reshape(in_dim, EH).astype(jnp.float32)
    w1s = w1p[:state_dim]
    w1a = w1p[state_dim:]

    w2p = jnp.einsum("eij,ef->eifj", w2, eye).reshape(EH, EH).astype(compute_dtype)
    w3p = jnp.einsum("eij,ef->eifj", w3, eye).reshape(EH, EH).astype(compute_dtype)

    out_w = max(128, ((E + 127) // 128) * 128)       # lane-dense output width
    wqp = jnp.einsum("eh,ef->ehf", wq[..., 0], eye).reshape(EH, E)
    wqp = jnp.pad(wqp, ((0, 0), (0, out_w - E))).astype(compute_dtype)

    b1p = b1.reshape(1, EH).astype(jnp.float32)
    b2p = b2.reshape(1, EH).astype(jnp.float32)
    b3p = b3.reshape(1, EH).astype(jnp.float32)
    bqp = jnp.pad(bq.reshape(1, E), ((0, 0), (0, out_w - E))).astype(jnp.float32)

    return dict(w1s=w1s, w1a=w1a, b1=b1p, w2=w2p, b2=b2p, w3=w3p, b3=b3p,
                wq=wqp, bq=bqp, num_critics=E)


def _critic_kernel(s_ref, a_ref, w1s_ref, w1a_ref, b1_ref, w2_ref, b2_ref,
                   w3_ref, b3_ref, wq_ref, bq_ref, out_ref):
    # s_ref/a_ref : (tb, S) / (tb, A) f32 batch tiles (concat replaced by 2 dots)
    # w1s/w1a     : (S, E*H) / (A, E*H) f32
    # w2/w3       : (E*H, E*H) block-diagonal, wq: (E*H, 128) lane-dense
    # bX          : (1, width) f32
    # out_ref     : (tb, 128) f32 (columns >= E are dead padding)
    cdt = w2_ref.dtype  # bf16 on TPU (f32 fallback); MXU accumulates in f32
    h = (jnp.dot(s_ref[...], w1s_ref[...], preferred_element_type=jnp.float32)
         + jnp.dot(a_ref[...], w1a_ref[...], preferred_element_type=jnp.float32)
         + b1_ref[...])
    h = jnp.maximum(h, 0.0)
    h = jnp.dot(h.astype(cdt), w2_ref[...],
                preferred_element_type=jnp.float32) + b2_ref[...]
    h = jnp.maximum(h, 0.0)
    h = jnp.dot(h.astype(cdt), w3_ref[...],
                preferred_element_type=jnp.float32) + b3_ref[...]
    h = jnp.maximum(h, 0.0)
    q = jnp.dot(h.astype(cdt), wq_ref[...],
                preferred_element_type=jnp.float32) + bq_ref[...]
    out_ref[...] = q.astype(out_ref.dtype)


def vectorized_critic_forward(state, action, packed, *, batch_tile=None):
    """state: [B, S], action: [B, A], packed: pack_ensemble_params(...).
    Returns q-values [E, B] (f32), matching q_values.squeeze(-1) in PyTorch."""
    w1s, w1a = packed["w1s"], packed["w1a"]
    b1, w2, b2 = packed["b1"], packed["w2"], packed["b2"]
    w3, b3, wq, bq = packed["w3"], packed["b3"], packed["wq"], packed["bq"]
    E = packed["num_critics"]
    S, EH = w1s.shape
    A = w1a.shape[0]
    out_w = wq.shape[1]
    B = state.shape[0]
    assert state.shape[1] == S and action.shape[1] == A

    kind = _device_kind()
    v7x = _is_v7x(kind)

    # --- batch tiling --------------------------------------------------------
    # Weights are VMEM-resident (constant index_map), so large batch tiles only
    # cost activation VMEM: default 2048 rows on v5e/v6e (128 MiB VMEM), 1024
    # on v7x (64 MiB), and on v7x force >=2 grid steps at large B so both
    # TensorCores get work.
    if batch_tile is None:
        batch_tile = 1024 if v7x else 2048
    tb = min(batch_tile, B)
    if v7x and B > 256:
        tb = min(tb, -(-B // 2))
    tb = max(8, ((tb + 7) // 8) * 8)
    b_pad = -(-B // tb) * tb
    grid = (b_pad // tb,)

    state_f = state.astype(jnp.float32)
    action_f = action.astype(jnp.float32)
    if b_pad != B:
        state_f = jnp.pad(state_f, ((0, b_pad - B), (0, 0)))
        action_f = jnp.pad(action_f, ((0, b_pad - B), (0, 0)))

    # --- VMEM budget (chip-aware, no artificial floor) ------------------------
    weights = (w1s, w1a, b1, w2, b2, w3, b3, wq, bq)
    weight_bytes = sum(int(a.size) * a.dtype.itemsize for a in weights)
    # Constant-index weight blocks never change: single-buffer them once the
    # footprint is big enough to matter (decisive on v7x's 64 MiB VMEM).
    single_buffer = hasattr(pl, "Buffered") and weight_bytes > (4 << 20)
    wbuf = 1 if single_buffer else 2
    io_bytes = 2 * tb * (S + A) * 4 + 2 * tb * out_w * 4    # dbl-buffered io tiles
    act_bytes = 4 * tb * EH * 4                             # f32 h intermediates + casts
    vmem_cap = (56 << 20) if v7x else (100 << 20)
    vmem_limit = int(min(wbuf * weight_bytes + io_bytes + act_bytes + (8 << 20),
                         vmem_cap))

    def const_spec(a):
        if single_buffer:
            return pl.BlockSpec(a.shape, lambda i: (0, 0),
                                pipeline_mode=pl.Buffered(1))
        return pl.BlockSpec(a.shape, lambda i: (0, 0))

    out = pl.pallas_call(
        _critic_kernel,
        out_shape=jax.ShapeDtypeStruct((b_pad, out_w), jnp.float32),
        grid_spec=pltpu.PrefetchScalarGridSpec(
            num_scalar_prefetch=0,
            grid=grid,
            in_specs=[
                pl.BlockSpec((tb, S), lambda i: (i, 0)),   # state tile
                pl.BlockSpec((tb, A), lambda i: (i, 0)),   # action tile
                const_spec(w1s), const_spec(w1a), const_spec(b1),
                const_spec(w2), const_spec(b2),
                const_spec(w3), const_spec(b3),
                const_spec(wq), const_spec(bq),
            ],
            out_specs=pl.BlockSpec((tb, out_w), lambda i: (i, 0)),
        ),
        compiler_params=pltpu.CompilerParams(
            dimension_semantics=("parallel",),
            vmem_limit_bytes=vmem_limit,
        ),
    )(state_f, action_f, w1s, w1a, b1, w2, b2, w3, b3, wq, bq)

    return out[:B, :E].T   # [E, B]


def init_params(key, state_dim, action_dim, num_critics, hidden_dim):
    """Synthetic init mirroring VectorizedLinear shapes.

    weight: (E, in, out), bias: (E, 1, out). Uniform(-1/sqrt(fan_in), +).
    """
    dims = [
        (state_dim + action_dim, hidden_dim),
        (hidden_dim, hidden_dim),
        (hidden_dim, hidden_dim),
        (hidden_dim, 1),
    ]
    params = []
    for (fan_in, fan_out) in dims:
        key, kw, kb = jax.random.split(key, 3)
        bound = 1.0 / math.sqrt(fan_in)
        w = jax.random.uniform(kw, (num_critics, fan_in, fan_out),
                               jnp.float32, -bound, bound)
        b = jax.random.uniform(kb, (num_critics, 1, fan_out),
                               jnp.float32, -bound, bound)
        params += [w, b]
    return tuple(params)


def _reference_forward(state, action, params):
    """Pure-JAX f32 reference matching the PyTorch semantics."""
    w1, b1, w2, b2, w3, b3, wq, bq = params
    sa = jnp.concatenate([state, action], axis=-1)
    x = jnp.broadcast_to(sa[None], (w1.shape[0],) + sa.shape)  # repeat_interleave
    h = jax.nn.relu(jnp.einsum('ebi,eio->ebo', x, w1) + b1)
    h = jax.nn.relu(jnp.einsum('ebi,eio->ebo', h, w2) + b2)
    h = jax.nn.relu(jnp.einsum('ebi,eio->ebo', h, w3) + b3)
    q = jnp.einsum('ebi,eio->ebo', h, wq) + bq
    return q[..., 0]


if __name__ == "__main__":
    # Small shapes consistent with the module's forward; E*H = 128 -> one
    # full-lane-width matmul per layer for the whole ensemble.
    batch, state_dim, action_dim = 8, 12, 4
    num_critics, hidden_dim = 4, 32

    key = jax.random.PRNGKey(0)
    key, ks, ka, kp = jax.random.split(key, 4)
    state = jax.random.normal(ks, (batch, state_dim), jnp.float32)
    action = jax.random.normal(ka, (batch, action_dim), jnp.float32)
    params = init_params(kp, state_dim, action_dim, num_critics, hidden_dim)

    compute_dtype = _default_compute_dtype()
    # Pack ONCE at parameter-load time; every forward call reuses this.
    packed = pack_ensemble_params(params, state_dim, compute_dtype)

    q = vectorized_critic_forward(state, action, packed)
    q = jax.block_until_ready(q)

    q_ref = _reference_forward(state, action, params)
    assert q.shape == (num_critics, batch)
    bf16 = jnp.dtype(compute_dtype) == jnp.dtype(jnp.bfloat16)
    tol = 5e-2 if bf16 else 1e-4
    assert jnp.allclose(q, q_ref, atol=tol, rtol=tol), \
        float(jnp.max(jnp.abs(q - q_ref)))

    print("KERNEL_OK")
</pallas_src>

<mosaic_0001>
module attributes {stable_mosaic.version = 11 : i64} {
  func.func @_critic_kernel(%arg0: i32, %arg1: memref<8x12xf32, #tpu.memory_space<vmem>>, %arg2: memref<8x4xf32, #tpu.memory_space<vmem>>, %arg3: memref<12x128xf32, #tpu.memory_space<vmem>>, %arg4: memref<4x128xf32, #tpu.memory_space<vmem>>, %arg5: memref<1x128xf32, #tpu.memory_space<vmem>>, %arg6: memref<128x128xf32, #tpu.memory_space<vmem>>, %arg7: memref<1x128xf32, #tpu.memory_space<vmem>>, %arg8: memref<128x128xf32, #tpu.memory_space<vmem>>, %arg9: memref<1x128xf32, #tpu.memory_space<vmem>>, %arg10: memref<128x128xf32, #tpu.memory_space<vmem>>, %arg11: memref<1x128xf32, #tpu.memory_space<vmem>>, %arg12: memref<8x128xf32, #tpu.memory_space<vmem>>) attributes {dimension_semantics = [#tpu.dimension_semantics<parallel>], iteration_bounds = array<i64: 1>, scalar_prefetch = 0 : i64, scratch_operands = 0 : i64, tpu.core_type = #tpu.core_type<tc>, window_params = [{transform_indices = @transform_0, window_bounds = array<i64: 8, 12>}, {transform_indices = @transform_1, window_bounds = array<i64: 8, 4>}, {pipeline_mode = #tpu.pipeline_mode<synchronous>, transform_indices = @transform_2, window_bounds = array<i64: 12, 128>}, {pipeline_mode = #tpu.pipeline_mode<synchronous>, transform_indices = @transform_3, window_bounds = array<i64: 4, 128>}, {pipeline_mode = #tpu.pipeline_mode<synchronous>, transform_indices = @transform_4, window_bounds = array<i64: 1, 128>}, {pipeline_mode = #tpu.pipeline_mode<synchronous>, transform_indices = @transform_5, window_bounds = array<i64: 128, 128>}, {pipeline_mode = #tpu.pipeline_mode<synchronous>, transform_indices = @transform_6, window_bounds = array<i64: 1, 128>}, {pipeline_mode = #tpu.pipeline_mode<synchronous>, transform_indices = @transform_7, window_bounds = array<i64: 128, 128>}, {pipeline_mode = #tpu.pipeline_mode<synchronous>, transform_indices = @transform_8, window_bounds = array<i64: 1, 128>}, {pipeline_mode = #tpu.pipeline_mode<synchronous>, transform_indices = @transform_9, window_bounds = array<i64: 128, 128>}, {pipeline_mode = #tpu.pipeline_mode<synchronous>, transform_indices = @transform_10, window_bounds = array<i64: 1, 128>}, {transform_indices = @transform_11, window_bounds = array<i64: 8, 128>}]} {
    %c0 = arith.constant 0 : index
    %c0_0 = arith.constant 0 : index
    %0 = vector.load %arg1[%c0, %c0_0] : memref<8x12xf32, #tpu.memory_space<vmem>>, vector<8x12xf32>
    %c0_1 = arith.constant 0 : index
    %c0_2 = arith.constant 0 : index
    %1 = vector.load %arg3[%c0_1, %c0_2] : memref<12x128xf32, #tpu.memory_space<vmem>>, vector<12x128xf32>
    %cst = arith.constant dense<0.000000e+00> : vector<8x128xf32>
    %2 = tpu.matmul %0, %1, %cst {dimension_numbers = #tpu.dot_dimension_numbers<[1], [0], [0], [1], [0, 0, 1, 1], [], []>} : vector<8x12xf32>, vector<12x128xf32>, vector<8x128xf32> -> vector<8x128xf32>
    %c0_3 = arith.constant 0 : index
    %c0_4 = arith.constant 0 : index
    %3 = vector.load %arg2[%c0_3, %c0_4] : memref<8x4xf32, #tpu.memory_space<vmem>>, vector<8x4xf32>
    %c0_5 = arith.constant 0 : index
    %c0_6 = arith.constant 0 : index
    %4 = vector.load %arg4[%c0_5, %c0_6] : memref<4x128xf32, #tpu.memory_space<vmem>>, vector<4x128xf32>
    %cst_7 = arith.constant dense<0.000000e+00> : vector<8x128xf32>
    %5 = tpu.matmul %3, %4, %cst_7 {dimension_numbers = #tpu.dot_dimension_numbers<[1], [0], [0], [1], [0, 0, 1, 1], [], []>} : vector<8x4xf32>, vector<4x128xf32>, vector<8x128xf32> -> vector<8x128xf32>
    %6 = arith.addf %2, %5 : vector<8x128xf32>
    %c0_8 = arith.constant 0 : index
    %c0_9 = arith.constant 0 : index
    %7 = vector.load %arg5[%c0_8, %c0_9] : memref<1x128xf32, #tpu.memory_space<vmem>>, vector<1x128xf32>
    %8 = vector.broadcast %7 : vector<1x128xf32> to vector<8x128xf32>
    %9 = arith.addf %6, %8 : vector<8x128xf32>
    %cst_10 = arith.constant 0.000000e+00 : f32
    %10 = vector.broadcast %cst_10 : f32 to vector<8x128xf32>
    %11 = arith.maximumf %9, %10 : vector<8x128xf32>
    %c0_11 = arith.constant 0 : index
    %c0_12 = arith.constant 0 : index
    %12 = vector.load %arg6[%c0_11, %c0_12] : memref<128x128xf32, #tpu.memory_space<vmem>>, vector<128x128xf32>
    %cst_13 = arith.constant dense<0.000000e+00> : vector<8x128xf32>
    %13 = tpu.matmul %11, %12, %cst_13 {dimension_numbers = #tpu.dot_dimension_numbers<[1], [0], [0], [1], [0, 0, 1, 1], [], []>} : vector<8x128xf32>, vector<128x128xf32>, vector<8x128xf32> -> vector<8x128xf32>
    %c0_14 = arith.constant 0 : index
    %c0_15 = arith.constant 0 : index
    %14 = vector.load %arg7[%c0_14, %c0_15] : memref<1x128xf32, #tpu.memory_space<vmem>>, vector<1x128xf32>
    %15 = vector.broadcast %14 : vector<1x128xf32> to vector<8x128xf32>
    %16 = arith.addf %13, %15 : vector<8x128xf32>
    %cst_16 = arith.constant 0.000000e+00 : f32
    %17 = vector.broadcast %cst_16 : f32 to vector<8x128xf32>
    %18 = arith.maximumf %16, %17 : vector<8x128xf32>
    %c0_17 = arith.constant 0 : index
    %c0_18 = arith.constant 0 : index
    %19 = vector.load %arg8[%c0_17, %c0_18] : memref<128x128xf32, #tpu.memory_space<vmem>>, vector<128x128xf32>
    %cst_19 = arith.constant dense<0.000000e+00> : vector<8x128xf32>
    %20 = tpu.matmul %18, %19, %cst_19 {dimension_numbers = #tpu.dot_dimension_numbers<[1], [0], [0], [1], [0, 0, 1, 1], [], []>} : vector<8x128xf32>, vector<128x128xf32>, vector<8x128xf32> -> vector<8x128xf32>
    %c0_20 = arith.constant 0 : index
    %c0_21 = arith.constant 0 : index
    %21 = vector.load %arg9[%c0_20, %c0_21] : memref<1x128xf32, #tpu.memory_space<vmem>>, vector<1x128xf32>
    %22 = vector.broadcast %21 : vector<1x128xf32> to vector<8x128xf32>
    %23 = arith.addf %20, %22 : vector<8x128xf32>
    %cst_22 = arith.constant 0.000000e+00 : f32
    %24 = vector.broadcast %cst_22 : f32 to vector<8x128xf32>
    %25 = arith.maximumf %23, %24 : vector<8x128xf32>
    %c0_23 = arith.constant 0 : index
    %c0_24 = arith.constant 0 : index
    %26 = vector.load %arg10[%c0_23, %c0_24] : memref<128x128xf32, #tpu.memory_space<vmem>>, vector<128x128xf32>
    %cst_25 = arith.constant dense<0.000000e+00> : vector<8x128xf32>
    %27 = tpu.matmul %25, %26, %cst_25 {dimension_numbers = #tpu.dot_dimension_numbers<[1], [0], [0], [1], [0, 0, 1, 1], [], []>} : vector<8x128xf32>, vector<128x128xf32>, vector<8x128xf32> -> vector<8x128xf32>
    %c0_26 = arith.constant 0 : index
    %c0_27 = arith.constant 0 : index
    %28 = vector.load %arg11[%c0_26, %c0_27] : memref<1x128xf32, #tpu.memory_space<vmem>>, vector<1x128xf32>
    %29 = vector.broadcast %28 : vector<1x128xf32> to vector<8x128xf32>
    %30 = arith.addf %27, %29 : vector<8x128xf32>
    %c0_28 = arith.constant 0 : index
    %c0_29 = arith.constant 0 : index
    %31 = vector.load %arg12[%c0_28, %c0_29] : memref<8x128xf32, #tpu.memory_space<vmem>>, vector<8x128xf32>
    tpu.vector_store %arg12[%c0_28, %c0_29], %30 {strides = array<i32>} : memref<8x128xf32, #tpu.memory_space<vmem>>, vector<8x128xf32>,
    return
  }
  func.func @transform_0(%arg0: i32) -> (i32, i32) {
    %c0_i32 = arith.constant 0 : i32
    %c0_i32_0 = arith.constant 0 : i32
    return %arg0, %c0_i32 : i32, i32
  }
  func.func @transform_1(%arg0: i32) -> (i32, i32) {
    %c0_i32 = arith.constant 0 : i32
    %c0_i32_0 = arith.constant 0 : i32
    return %arg0, %c0_i32 : i32, i32
  }
  func.func @transform_2(%arg0: i32) -> (i32, i32) {
    %c0_i32 = arith.constant 0 : i32
    %c0_i32_0 = arith.constant 0 : i32
    %c0_i32_1 = arith.constant 0 : i32
    return %c0_i32, %c0_i32_0 : i32, i32
  }
  func.func @transform_3(%arg0: i32) -> (i32, i32) {
    %c0_i32 = arith.constant 0 : i32
    %c0_i32_0 = arith.constant 0 : i32
    %c0_i32_1 = arith.constant 0 : i32
    return %c0_i32, %c0_i32_0 : i32, i32
  }
  func.func @transform_4(%arg0: i32) -> (i32, i32) {
    %c0_i32 = arith.constant 0 : i32
    %c0_i32_0 = arith.constant 0 : i32
    %c0_i32_1 = arith.constant 0 : i32
    return %c0_i32, %c0_i32_0 : i32, i32
  }
  func.func @transform_5(%arg0: i32) -> (i32, i32) {
    %c0_i32 = arith.constant 0 : i32
    %c0_i32_0 = arith.constant 0 : i32
    %c0_i32_1 = arith.constant 0 : i32
    return %c0_i32, %c0_i32_0 : i32, i32
  }
  func.func @transform_6(%arg0: i32) -> (i32, i32) {
    %c0_i32 = arith.constant 0 : i32
    %c0_i32_0 = arith.constant 0 : i32
    %c0_i32_1 = arith.constant 0 : i32
    return %c0_i32, %c0_i32_0 : i32, i32
  }
  func.func @transform_7(%arg0: i32) -> (i32, i32) {
    %c0_i32 = arith.constant 0 : i32
    %c0_i32_0 = arith.constant 0 : i32
    %c0_i32_1 = arith.constant 0 : i32
    return %c0_i32, %c0_i32_0 : i32, i32
  }
  func.func @transform_8(%arg0: i32) -> (i32, i32) {
    %c0_i32 = arith.constant 0 : i32
    %c0_i32_0 = arith.constant 0 : i32
    %c0_i32_1 = arith.constant 0 : i32
    return %c0_i32, %c0_i32_0 : i32, i32
  }
  func.func @transform_9(%arg0: i32) -> (i32, i32) {
    %c0_i32 = arith.constant 0 : i32
    %c0_i32_0 = arith.constant 0 : i32
    %c0_i32_1 = arith.constant 0 : i32
    return %c0_i32, %c0_i32_0 : i32, i32
  }
  func.func @transform_10(%arg0: i32) -> (i32, i32) {
    %c0_i32 = arith.constant 0 : i32
    %c0_i32_0 = arith.constant 0 : i32
    %c0_i32_1 = arith.constant 0 : i32
    return %c0_i32, %c0_i32_0 : i32, i32
  }
  func.func @transform_11(%arg0: i32) -> (i32, i32) {
    %c0_i32 = arith.constant 0 : i32
    %c0_i32_0 = arith.constant 0 : i32
    return %arg0, %c0_i32 : i32, i32
  }
}

</mosaic_0001>

<llo_original>
// kernel: tpu_custom_call.1
$region0: #{tpu_custom_call.1}
  #allocation0 [shape = 'u32[]', space=smem, size = 0x4, offset = 0x4, fixed_abs, tag = 'smem constant byte address 0x4 - core index']
  #allocation1 [shape = 'u32[72,128]{1,0:T(1,128)}', space=vmem, size = 0x9000, scoped, tag = 'internal scratch']
  %s0 = inlined_call_operand.vmem [shape: f32[8,12], index: 0, kind: input, shape index: {}]
  %s1 = inlined_call_operand.vmem [shape: f32[8,4], index: 1, kind: input, shape index: {}]
  %s2 = inlined_call_operand.hbm [shape: f32[12,128], index: 2, kind: input, shape index: {}]
  %s3 = inlined_call_operand.vmem [shape: f32[4,128], index: 3, kind: input, shape index: {}]
  %s4 = inlined_call_operand.vmem [shape: f32[1,128], index: 4, kind: input, shape index: {}]
  %s5 = inlined_call_operand.hbm [shape: f32[128,128], index: 5, kind: input, shape index: {}]
  %s6 = inlined_call_operand.vmem [shape: f32[1,128], index: 6, kind: input, shape index: {}]
  %s7 = inlined_call_operand.hbm [shape: f32[128,128], index: 7, kind: input, shape index: {}]
  %s8 = inlined_call_operand.vmem [shape: f32[1,128], index: 8, kind: input, shape index: {}]
  %s9 = inlined_call_operand.hbm [shape: f32[128,128], index: 9, kind: input, shape index: {}]
  %s10 = inlined_call_operand.vmem [shape: f32[1,128], index: 10, kind: input, shape index: {}]
  %s11 = inlined_call_operand.hbm [shape: f32[8,128], index: 11, kind: output, shape index: {}]
  %s12 = sld [smem:[#allocation0]]
  $region70: #{tpu_custom_call.1} parent=0
    _
  %s14 = ssub.s32 1, %s12
  %s15 = scalar_select 0, %s14, %s12
  $region1: #{tpu_custom_call.1} parent=0
    #allocation2 [shape = 'u8[8192]{0}', space=vmem, size = 0x2000, scoped, tag = 'input window, operand 2, single buffered']
    #allocation3 [shape = 's32[1]{0}', space=sflag, size = 0x4, scoped, tag = 'scoped memory for tpu_custom_call.1']
    #allocation4 [shape = 's32[1]{0}', space=sflag, size = 0x4, scoped, tag = 'scoped memory for tpu_custom_call.1']
    #allocation5 [shape = 'u8[65536]{0}', space=vmem, size = 0x10000, scoped, tag = 'input window, operand 5, single buffered']
    #allocation6 [shape = 's32[1]{0}', space=sflag, size = 0x4, scoped, tag = 'scoped memory for tpu_custom_call.1']
    #allocation7 [shape = 'u8[65536]{0}', space=vmem, size = 0x10000, scoped, tag = 'input window, operand 7, single buffered']
    #allocation8 [shape = 'u8[65536]{0}', space=vmem, size = 0x10000, scoped, tag = 'input window, operand 9, single buffered']
    #allocation9 [shape = 's32[1]{0}', space=sflag, size = 0x4, scoped, tag = 'scoped memory for tpu_custom_call.1']
    #allocation10 [shape = 'u8[4096]{0}', space=vmem, size = 0x1000, scoped, tag = 'output window, operand 0, single buffered']
    %16 = vsyncpa [#allocation3], 0
    %17 = vsyncpa [#allocation6], 0
    %18 = vsyncpa [#allocation9], 0
    %19 = vsyncpa [#allocation4], 0
    // Predicated region
    $region2: #{tpu_custom_call.1} parent=1 // pred_check
      _
    $region3: #{tpu_custom_call.1} parent=1 // pred_check_branch
      %21 = sbr.rel (0) target = $region5
    $region4: #{tpu_custom_call.1} parent=1 // pred_region
      _
    $region5: #{tpu_custom_call.1} parent=1 // pred_fallthru
      _
    // Predicated region
    $region6: #{tpu_custom_call.1} parent=1 // pred_check
      _
    $region7: #{tpu_custom_call.1} parent=1 // pred_check_branch
      %23 = sbr.rel (0) target = $region9
    $region8: #{tpu_custom_call.1} parent=1 // pred_region
      _
    $region9: #{tpu_custom_call.1} parent=1 // pred_fallthru
      _
    // Predicated region
    $region10: #{tpu_custom_call.1} parent=1 // pred_check
      _
    $region11: #{tpu_custom_call.1} parent=1 // pred_check_branch
      %25 = sbr.rel (0) target = $region13
    $region12: #{tpu_custom_call.1} parent=1 // pred_region
      %27 = vsyncadd [#allocation3], 0
      %s28 = sshll.u32 %s2, 4
      %s29 = int_to_ptr.hbm [resolvable:$true] %s28
      %s30 = sshll.u32 [#allocation2], 4
      %s31 = int_to_ptr.vmem [resolvable:$true] %s30
      %36 = dma.hbm_to_vmem [thread:$0]  %s29, 256, %s31, [#allocation3], 128, 128, 8
    $region13: #{tpu_custom_call.1} parent=1 // pred_fallthru
      _
    // Predicated region
    $region14: #{tpu_custom_call.1} parent=1 // pred_check
      _
    $region15: #{tpu_custom_call.1} parent=1 // pred_check_branch
      %38 = sbr.rel (0) target = $region17
    $region16: #{tpu_custom_call.1} parent=1 // pred_region
      _
    $region17: #{tpu_custom_call.1} parent=1 // pred_fallthru
      _
    // Predicated region
    $region18: #{tpu_custom_call.1} parent=1 // pred_check
      _
    $region19: #{tpu_custom_call.1} parent=1 // pred_check_branch
      %40 = sbr.rel (0) target = $region21
    $region20: #{tpu_custom_call.1} parent=1 // pred_region
      _
    $region21: #{tpu_custom_call.1} parent=1 // pred_fallthru
      _
    // Predicated region
    $region22: #{tpu_custom_call.1} parent=1 // pred_check
      _
    $region23: #{tpu_custom_call.1} parent=1 // pred_check_branch
      %42 = sbr.rel (0) target = $region25
    $region24: #{tpu_custom_call.1} parent=1 // pred_region
      %44 = vsyncadd [#allocation6], 0
      %s45 = sshll.u32 %s5, 4
      %s46 = int_to_ptr.hbm [resolvable:$true] %s45
      %s47 = sshll.u32 [#allocation5], 4
      %s48 = int_to_ptr.vmem [resolvable:$true] %s47
      %53 = dma.hbm_to_vmem [thread:$0]  %s46, 2048, %s48, [#allocation6], 128, 128, 8
    $region25: #{tpu_custom_call.1} parent=1 // pred_fallthru
      _
    // Predicated region
    $region26: #{tpu_custom_call.1} parent=1 // pred_check
      _
    $region27: #{tpu_custom_call.1} parent=1 // pred_check_branch
      %55 = sbr.rel (0) target = $region29
    $region28: #{tpu_custom_call.1} parent=1 // pred_region
      _
    $region29: #{tpu_custom_call.1} parent=1 // pred_fallthru
      _
    // Predicated region
    $region30: #{tpu_custom_call.1} parent=1 // pred_check
      _
    $region31: #{tpu_custom_call.1} parent=1 // pred_check_branch
      %57 = sbr.rel (0) target = $region33
    $region32: #{tpu_custom_call.1} parent=1 // pred_region
      %59 = vsyncadd [#allocation6], 0
      %s60 = sshll.u32 %s7, 4
      %s61 = int_to_ptr.hbm [resolvable:$true] %s60
      %s62 = sshll.u32 [#allocation7], 4
      %s63 = int_to_ptr.vmem [resolvable:$true] %s62
      %68 = dma.hbm_to_vmem [thread:$0]  %s61, 2048, %s63, [#allocation6], 128, 128, 8
    $region33: #{tpu_custom_call.1} parent=1 // pred_fallthru
      _
    // Predicated region
    $region34: #{tpu_custom_call.1} parent=1 // pred_check
      _
    $region35: #{tpu_custom_call.1} parent=1 // pred_check_branch
      %70 = sbr.rel (0) target = $region37
    $region36: #{tpu_custom_call.1} parent=1 // pred_region
      _
    $region37: #{tpu_custom_call.1} parent=1 // pred_fallthru
      _
    // Predicated region
    $region38: #{tpu_custom_call.1} parent=1 // pred_check
      _
    $region39: #{tpu_custom_call.1} parent=1 // pred_check_branch
      %72 = sbr.rel (0) target = $region41
    $region40: #{tpu_custom_call.1} parent=1 // pred_region
      %74 = vsyncadd [#allocation9], 0
      %s75 = sshll.u32 %s9, 4
      %s76 = int_to_ptr.hbm [resolvable:$true] %s75
      %s77 = sshll.u32 [#allocation8], 4
      %s78 = int_to_ptr.vmem [resolvable:$true] %s77
      %83 = dma.hbm_to_vmem [thread:$0]  %s76, 2048, %s78, [#allocation9], 128, 128, 8
    $region41: #{tpu_custom_call.1} parent=1 // pred_fallthru
      _
    // Predicated region
    $region42: #{tpu_custom_call.1} parent=1 // pred_check
      _
    $region43: #{tpu_custom_call.1} parent=1 // pred_check_branch
      %85 = sbr.rel (0) target = $region45
    $region44: #{tpu_custom_call.1} parent=1 // pred_region
      _
    $region45: #{tpu_custom_call.1} parent=1 // pred_fallthru
      _
    // Predicated region
    $region46: #{tpu_custom_call.1} parent=1 // pred_check
      _
    $region47: #{tpu_custom_call.1} parent=1 // pred_check_branch
      %87 = sbr.rel (0) target = $region49
    $region48: #{tpu_custom_call.1} parent=1 // pred_region
      %89 = dma.done [#allocation3], 256
    $region49: #{tpu_custom_call.1} parent=1 // pred_fallthru
      _
    // Predicated region
    $region50: #{tpu_custom_call.1} parent=1 // pred_check
      _
    $region51: #{tpu_custom_call.1} parent=1 // pred_check_branch
      %91 = sbr.rel (0) target = $region53
    $region52: #{tpu_custom_call.1} parent=1 // pred_region
      %93 = dma.done [#allocation6], 2048
    $region53: #{tpu_custom_call.1} parent=1 // pred_fallthru
      _
    // Predicated region
    $region54: #{tpu_custom_call.1} parent=1 // pred_check
      _
    $region55: #{tpu_custom_call.1} parent=1 // pred_check_branch
      %95 = sbr.rel (0) target = $region57
    $region56: #{tpu_custom_call.1} parent=1 // pred_region
      %97 = dma.done [#allocation6], 2048
    $region57: #{tpu_custom_call.1} parent=1 // pred_fallthru
      _
    // Predicated region
    $region58: #{tpu_custom_call.1} parent=1 // pred_check
      _
    $region59: #{tpu_custom_call.1} parent=1 // pred_check_branch
      %99 = sbr.rel (0) target = $region61
    $region60: #{tpu_custom_call.1} parent=1 // pred_region
      %101 = dma.done [#allocation9], 2048
    $region61: #{tpu_custom_call.1} parent=1 // pred_fallthru
      _
    %v102 = vld [vmem:[%s0] sm:$0xff]
    %v103 = vld [vmem:[#allocation2] sm:$0xff]
    %v104 = vld [vmem:[#allocation2 + $0x8] sm:$0xf]
    %v105 = vld [vmem:[%s1] sm:$0xff]
    %v106 = vld [vmem:[%s3] sm:$0xf]
    %vm107 = vcmask 31744
    %v109 = vsel %vm107, %v105, 0
    %vm111 = vcmask 1043456
    %v113 = vsel %vm111, %v106, 0
    %115 = vmatpush.msra.mxu0 0.0
    %116 = vmatpush.msra.mxu0 0.0
    %117 = vmatpush.msra.mxu0 0.0
    %118 = vmatpush.msra.mxu0 0.0
    %119 = vmatpush.msra.mxu0 0.0
    %120 = vmatpush.msra.mxu0 0.0
    %121 = vmatpush.msra.mxu0 0.0
    %122 = vmatpush.msra.mxu0 0.0
    %123 = vmatpush.msra.mxu0 0.0
    %124 = vmatpush.msra.mxu0 0.0
    %125 = vmatpush.msra.mxu0 0.0
    %126 = vmatpush.msra.mxu0 0.0
    %127 = vmatpush.msra.mxu0 0.0
    %128 = vmatpush.msra.mxu0 0.0
    %129 = vmatpush.msra.mxu0 0.0
    %130 = vmatpush.msra.mxu0 %v113
    %131 = vmatmul.f32.gmra.mxu0 %v109
    %v132 = vpop.f32.mrf.mxu0
    %v133 = vadd.f32 0.0, %v132
    %134 = vdwg.mxu0
    %vm135 = vcmask 97280
    %v137 = vsel %vm135, %v102, 0
    %v140 = vsel %vm111, %v104, 0
    %142 = vmatpush.msra.mxu0 0.0
    %143 = vmatpush.msra.mxu0 0.0
    %144 = vmatpush.msra.mxu0 0.0
    %145 = vmatpush.msra.mxu0 0.0
    %146 = vmatpush.msra.mxu0 0.0
    %147 = vmatpush.msra.mxu0 0.0
    %148 = vmatpush.msra.mxu0 0.0
    %149 = vmatpush.msra.mxu0 0.0
    %150 = vmatpush.msra.mxu0 0.0
    %151 = vmatpush.msra.mxu0 0.0
    %152 = vmatpush.msra.mxu0 0.0
    %153 = vmatpush.msra.mxu0 0.0
    %154 = vmatpush.msra.mxu0 0.0
    %155 = vmatpush.msra.mxu0 0.0
    %156 = vmatpush.msra.mxu0 %v140
    %157 = vmatpush.msra.mxu0 %v103
    %158 = vmatmul.f32.gmra.mxu0 %v137
    %v159 = vpop.f32.mrf.mxu0
    %v160 = vadd.f32 %v133, %v159
    %161 = vdwg.mxu0
    %v162 = vld [vmem:[%s4] sm:$0x1]
    %v164 = vperm.slane %v162, 0
    %v166 = vadd.f32 %v160, %v164
    %v167 = vmax.f32 %v166, 0.0
    %v168 = vld [vmem:[#allocation5] sm:$0xff]
    %v169 = vld [vmem:[#allocation5 + $0x8] sm:$0xff]
    %v170 = vld [vmem:[#allocation5 + $0x10] sm:$0xff]
    %v171 = vld [vmem:[#allocation5 + $0x18] sm:$0xff]
    %v172 = vld [vmem:[#allocation5 + $0x20] sm:$0xff]
    %v173 = vld [vmem:[#allocation5 + $0x28] sm:$0xff]
    %v174 = vld [vmem:[#allocation5 + $0x30] sm:$0xff]
    %v175 = vld [vmem:[#allocation5 + $0x38] sm:$0xff]
    %v176 = vld [vmem:[#allocation5 + $0x40] sm:$0xff]
    %v177 = vld [vmem:[#allocation5 + $0x48] sm:$0xff]
    %v178 = vld [vmem:[#allocation5 + $0x50] sm:$0xff]
    %v179 = vld [vmem:[#allocation5 + $0x58] sm:$0xff]
    %v180 = vld [vmem:[#allocation5 + $0x60] sm:$0xff]
    %v181 = vld [vmem:[#allocation5 + $0x68] sm:$0xff]
    %v182 = vld [vmem:[#allocation5 + $0x70] sm:$0xff]
    %v183 = vld [vmem:[#allocation5 + $0x78] sm:$0xff]
    %v184 = vld [vmem:[%s6] sm:$0x1]
    %v186 = vperm.slane %v184, 0
    %188 = vmatpush.msra.mxu0 %v183
    %189 = vmatpush.msra.mxu0 %v182
    %190 = vmatpush.msra.mxu0 %v181
    %191 = vmatpush.msra.mxu0 %v180
    %192 = vmatpush.msra.mxu0 %v179
    %193 = vmatpush.msra.mxu0 %v178
    %194 = vmatpush.msra.mxu0 %v177
    %195 = vmatpush.msra.mxu0 %v176
    %196 = vmatpush.msra.mxu0 %v175
    %197 = vmatpush.msra.mxu0 %v174
    %198 = vmatpush.msra.mxu0 %v173
    %199 = vmatpush.msra.mxu0 %v172
    %200 = vmatpush.msra.mxu0 %v171
    %201 = vmatpush.msra.mxu0 %v170
    %202 = vmatpush.msra.mxu0 %v169
    %203 = vmatpush.msra.mxu0 %v168
    %204 = vmatmul.f32.gmra.mxu0 %v167
    %v205 = vpop.f32.mrf.mxu0
    %v206 = vadd.f32 %v186, %v205
    %207 = vdwg.mxu0
    %v208 = vmax.f32 %v206, 0.0
    %v209 = vld [vmem:[#allocation7] sm:$0xff]
    %v210 = vld [vmem:[#allocation7 + $0x8] sm:$0xff]
    %v211 = vld [vmem:[#allocation7 + $0x10] sm:$0xff]
    %v212 = vld [vmem:[#allocation7 + $0x18] sm:$0xff]
    %v213 = vld [vmem:[#allocation7 + $0x20] sm:$0xff]
    %v214 = vld [vmem:[#allocation7 + $0x28] sm:$0xff]
    %v215 = vld [vmem:[#allocation7 + $0x30] sm:$0xff]
    %v216 = vld [vmem:[#allocation7 + $0x38] sm:$0xff]
    %v217 = vld [vmem:[#allocation7 + $0x40] sm:$0xff]
    %v218 = vld [vmem:[#allocation7 + $0x48] sm:$0xff]
    %v219 = vld [vmem:[#allocation7 + $0x50] sm:$0xff]
    %v220 = vld [vmem:[#allocation7 + $0x58] sm:$0xff]
    %v221 = vld [vmem:[#allocation7 + $0x60] sm:$0xff]
    %v222 = vld [vmem:[#allocation7 + $0x68] sm:$0xff]
    %v223 = vld [vmem:[#allocation7 + $0x70] sm:$0xff]
    %v224 = vld [vmem:[#allocation7 + $0x78] sm:$0xff]
    %v225 = vld [vmem:[%s8] sm:$0x1]
    %v227 = vperm.slane %v225, 0
    %229 = vmatpush.msra.mxu0 %v224
    %230 = vmatpush.msra.mxu0 %v223
    %231 = vmatpush.msra.mxu0 %v222
    %232 = vmatpush.msra.mxu0 %v221
    %233 = vmatpush.msra.mxu0 %v220
    %234 = vmatpush.msra.mxu0 %v219
    %235 = vmatpush.msra.mxu0 %v218
    %236 = vmatpush.msra.mxu0 %v217
    %237 = vmatpush.msra.mxu0 %v216
    %238 = vmatpush.msra.mxu0 %v215
    %239 = vmatpush.msra.mxu0 %v214
    %240 = vmatpush.msra.mxu0 %v213
    %241 = vmatpush.msra.mxu0 %v212
    %242 = vmatpush.msra.mxu0 %v211
    %243 = vmatpush.msra.mxu0 %v210
    %244 = vmatpush.msra.mxu0 %v209
    %245 = vmatmul.f32.gmra.mxu0 %v208
    %v246 = vpop.f32.mrf.mxu0
    %v247 = vadd.f32 %v227, %v246
    %248 = vdwg.mxu0
    %v249 = vmax.f32 %v247, 0.0
    %v250 = vld [vmem:[#allocation8] sm:$0xff]
    %v251 = vld [vmem:[#allocation8 + $0x8] sm:$0xff]
    %v252 = vld [vmem:[#allocation8 + $0x10] sm:$0xff]
    %v253 = vld [vmem:[#allocation8 + $0x18] sm:$0xff]
    %v254 = vld [vmem:[#allocation8 + $0x20] sm:$0xff]
    %v255 = vld [vmem:[#allocation8 + $0x28] sm:$0xff]
    %v256 = vld [vmem:[#allocation8 + $0x30] sm:$0xff]
    %v257 = vld [vmem:[#allocation8 + $0x38] sm:$0xff]
    %v258 = vld [vmem:[#allocation8 + $0x40] sm:$0xff]
    %v259 = vld [vmem:[#allocation8 + $0x48] sm:$0xff]
    %v260 = vld [vmem:[#allocation8 + $0x50] sm:$0xff]
    %v261 = vld [vmem:[#allocation8 + $0x58] sm:$0xff]
    %v262 = vld [vmem:[#allocation8 + $0x60] sm:$0xff]
    %v263 = vld [vmem:[#allocation8 + $0x68] sm:$0xff]
    %v264 = vld [vmem:[#allocation8 + $0x70] sm:$0xff]
    %v265 = vld [vmem:[#allocation8 + $0x78] sm:$0xff]
    %v266 = vld [vmem:[%s10] sm:$0x1]
    %v268 = vperm.slane %v266, 0
    %270 = vmatpush.msra.mxu0 %v265
    %271 = vmatpush.msra.mxu0 %v264
    %272 = vmatpush.msra.mxu0 %v263
    %273 = vmatpush.msra.mxu0 %v262
    %274 = vmatpush.msra.mxu0 %v261
    %275 = vmatpush.msra.mxu0 %v260
    %276 = vmatpush.msra.mxu0 %v259
    %277 = vmatpush.msra.mxu0 %v258
    %278 = vmatpush.msra.mxu0 %v257
    %279 = vmatpush.msra.mxu0 %v256
    %280 = vmatpush.msra.mxu0 %v255
    %281 = vmatpush.msra.mxu0 %v254
    %282 = vmatpush.msra.mxu0 %v253
    %283 = vmatpush.msra.mxu0 %v252
    %284 = vmatpush.msra.mxu0 %v251
    %285 = vmatpush.msra.mxu0 %v250
    %286 = vmatmul.f32.gmra.mxu0 %v249
    %v287 = vpop.f32.mrf.mxu0
    %v288 = vadd.f32 %v268, %v287
    %289 = vdwg.mxu0
    %290 = vst [vmem:[#allocation10] sm:$0xff] %v288
    // Predicated region
    $region62: #{tpu_custom_call.1} parent=1 // pred_check
      _
    $region63: #{tpu_custom_call.1} parent=1 // pred_check_branch
      %292 = sbr.rel (0) target = $region65
    $region64: #{tpu_custom_call.1} parent=1 // pred_region
      %294 = vsyncadd [#allocation4], 0
      %s296 = sshll.u32 [#allocation10], 4
      %s297 = int_to_ptr.vmem [resolvable:$true] %s296
      %s298 = sshll.u32 %s11, 4
      %s299 = int_to_ptr.hbm [resolvable:$true] %s298
      %301 = dma.vmem_to_hbm [thread:$0]  %s297, 128, %s299, [#allocation4]
    $region65: #{tpu_custom_call.1} parent=1 // pred_fallthru
      _
    // Predicated region
    $region66: #{tpu_custom_call.1} parent=1 // pred_check
      _
    $region67: #{tpu_custom_call.1} parent=1 // pred_check_branch
      %303 = sbr.rel (0) target = $region69
    $region68: #{tpu_custom_call.1} parent=1 // pred_region
      %305 = dma.done [#allocation4], 128
    $region69: #{tpu_custom_call.1} parent=1 // pred_fallthru
      _
    %306 = vsyncpa [#allocation3], 1
    %307 = vsyncpa [#allocation6], 1
    %308 = vsyncpa [#allocation9], 1
    %309 = vsyncpa [#allocation4], 1

</llo_original>
